<compile_context>
chip_gen: v6e
topology: v6e:2x2x1
jax: 0.10.0
libtpu: 0.0.40
codegen_flags: <defaults>
</compile_context>

<pallas_src>
import jax
import jax.numpy as jnp
from jax.experimental import pallas as pl
from jax.experimental.pallas import tpu as pltpu


EPS = 1e-5


def _bn_kernel(x_ref, gamma_ref, beta_ref, o_ref):
    # x_ref:     (Cb, R)  — one block of Cb channels, full batch*spatial row
    # gamma_ref: (Cb, 1)
    # beta_ref:  (Cb, 1)
    # o_ref:     (Cb, R)
    x = x_ref[...].astype(jnp.float32)
    _, r = x.shape
    inv_r = 1.0 / r

    # Per-channel mean (lane-axis reduce -> XLU, effectively free here).
    mean = jnp.sum(x, axis=1, keepdims=True) * inv_r          # (Cb, 1)
    diff = x - mean                                            # (Cb, R)
    # Two-pass biased variance in f32 (data already in VMEM, so this is cheap
    # and avoids E[x^2]-mean^2 cancellation).
    var = jnp.sum(diff * diff, axis=1, keepdims=True) * inv_r  # (Cb, 1)
    inv_std = jax.lax.rsqrt(var + EPS)                         # (Cb, 1)

    scale = gamma_ref[...] * inv_std                           # (Cb, 1)
    o_ref[...] = (diff * scale + beta_ref[...]).astype(o_ref.dtype)


def batchnorm2d(x_nchw, gamma, beta, *, c_block=None):
    """Training-mode BatchNorm2d forward (batch stats, affine).

    x_nchw: (N, C, H, W) float32. gamma/beta: (C,) float32.
    """
    N, C, H, W = x_nchw.shape
    R = N * H * W

    if c_block is None or C % c_block != 0:
        c_block = C  # single block: per-step overhead dominates at this size

    # Present a 2D (C, N*H*W) slab: channels on sublanes, spatial lane-dense.
    if N == 1:
        x2d = x_nchw.reshape(C, R)                 # free reshape
    else:
        # NCHW with N > 1: channel must come first — one transpose pass.
        x2d = jnp.transpose(x_nchw.reshape(N, C, H * W), (1, 0, 2)).reshape(C, R)

    g2d = gamma.reshape(C, 1).astype(jnp.float32)
    b2d = beta.reshape(C, 1).astype(jnp.float32)

    out2d = pl.pallas_call(
        _bn_kernel,
        out_shape=jax.ShapeDtypeStruct((C, R), x_nchw.dtype),
        grid=(C // c_block,),
        in_specs=[
            pl.BlockSpec((c_block, R), lambda i: (i, 0)),
            pl.BlockSpec((c_block, 1), lambda i: (i, 0)),
            pl.BlockSpec((c_block, 1), lambda i: (i, 0)),
        ],
        out_specs=pl.BlockSpec((c_block, R), lambda i: (i, 0)),
        compiler_params=pltpu.CompilerParams(
            dimension_semantics=("parallel",),  # channel blocks independent
        ),
    )(x2d, g2d, b2d)

    if N == 1:
        return out2d.reshape(N, C, H, W)
    return jnp.transpose(out2d.reshape(C, N, H * W), (1, 0, 2)).reshape(N, C, H, W)


def reference_bn(x_nchw, gamma, beta):
    mean = jnp.mean(x_nchw, axis=(0, 2, 3), keepdims=True)
    var = jnp.mean((x_nchw - mean) ** 2, axis=(0, 2, 3), keepdims=True)
    g = gamma.reshape(1, -1, 1, 1)
    b = beta.reshape(1, -1, 1, 1)
    return (x_nchw - mean) * jax.lax.rsqrt(var + EPS) * g + b


if __name__ == "__main__":
    key = jax.random.PRNGKey(0)
    kx, kg, kb = jax.random.split(key, 3)
    # Shape from the original module: BatchNorm2d(32) on (1, 32, 28, 28).
    x = jax.random.normal(kx, (1, 32, 28, 28), dtype=jnp.float32)
    # PyTorch BatchNorm2d inits weight=1, bias=0; perturb deterministically so
    # the affine path is exercised.
    gamma = 1.0 + 0.1 * jax.random.normal(kg, (32,), dtype=jnp.float32)
    beta = 0.1 * jax.random.normal(kb, (32,), dtype=jnp.float32)

    out = batchnorm2d(x, gamma, beta)
    jax.block_until_ready(out)

    ref = reference_bn(x, gamma, beta)
    assert out.shape == x.shape
    assert jnp.max(jnp.abs(out - ref)) < 1e-4

    print("KERNEL_OK")
</pallas_src>

<mosaic_0001>
module attributes {stable_mosaic.version = 11 : i64} {
  func.func @_bn_kernel(%arg0: i32, %arg1: memref<32x784xf32, #tpu.memory_space<vmem>>, %arg2: memref<32x1xf32, #tpu.memory_space<vmem>>, %arg3: memref<32x1xf32, #tpu.memory_space<vmem>>, %arg4: memref<32x784xf32, #tpu.memory_space<vmem>>) attributes {dimension_semantics = [#tpu.dimension_semantics<parallel>], iteration_bounds = array<i64: 1>, scalar_prefetch = 0 : i64, scratch_operands = 0 : i64, tpu.core_type = #tpu.core_type<tc>, window_params = [{transform_indices = @transform_0, window_bounds = array<i64: 32, 784>}, {transform_indices = @transform_1, window_bounds = array<i64: 32, 1>}, {transform_indices = @transform_2, window_bounds = array<i64: 32, 1>}, {transform_indices = @transform_3, window_bounds = array<i64: 32, 784>}]} {
    %c0 = arith.constant 0 : index
    %c0_0 = arith.constant 0 : index
    %0 = vector.load %arg1[%c0, %c0_0] : memref<32x784xf32, #tpu.memory_space<vmem>>, vector<32x784xf32>
    %cst = arith.constant dense<0.000000e+00> : vector<32xf32>
    %1 = vector.multi_reduction <add>, %0, %cst [1] : vector<32x784xf32> to vector<32xf32>
    %2 = vector.shape_cast %1 : vector<32xf32> to vector<32x1xf32>
    %cst_1 = arith.constant 0.00127551018 : f32
    %3 = vector.broadcast %cst_1 : f32 to vector<32x1xf32>
    %4 = arith.mulf %2, %3 : vector<32x1xf32>
    %5 = vector.broadcast %4 : vector<32x1xf32> to vector<32x784xf32>
    %6 = arith.subf %0, %5 : vector<32x784xf32>
    %7 = arith.mulf %6, %6 : vector<32x784xf32>
    %cst_2 = arith.constant dense<0.000000e+00> : vector<32xf32>
    %8 = vector.multi_reduction <add>, %7, %cst_2 [1] : vector<32x784xf32> to vector<32xf32>
    %9 = vector.shape_cast %8 : vector<32xf32> to vector<32x1xf32>
    %cst_3 = arith.constant 0.00127551018 : f32
    %10 = vector.broadcast %cst_3 : f32 to vector<32x1xf32>
    %11 = arith.mulf %9, %10 : vector<32x1xf32>
    %cst_4 = arith.constant 9.99999974E-6 : f32
    %12 = vector.broadcast %cst_4 : f32 to vector<32x1xf32>
    %13 = arith.addf %11, %12 : vector<32x1xf32>
    %14 = math.rsqrt %13 : vector<32x1xf32>
    %c0_5 = arith.constant 0 : index
    %c0_6 = arith.constant 0 : index
    %15 = vector.load %arg2[%c0_5, %c0_6] : memref<32x1xf32, #tpu.memory_space<vmem>>, vector<32x1xf32>
    %16 = arith.mulf %15, %14 : vector<32x1xf32>
    %17 = vector.broadcast %16 : vector<32x1xf32> to vector<32x784xf32>
    %18 = arith.mulf %6, %17 : vector<32x784xf32>
    %c0_7 = arith.constant 0 : index
    %c0_8 = arith.constant 0 : index
    %19 = vector.load %arg3[%c0_7, %c0_8] : memref<32x1xf32, #tpu.memory_space<vmem>>, vector<32x1xf32>
    %20 = vector.broadcast %19 : vector<32x1xf32> to vector<32x784xf32>
    %21 = arith.addf %18, %20 : vector<32x784xf32>
    %c0_9 = arith.constant 0 : index
    %c0_10 = arith.constant 0 : index
    %22 = vector.load %arg4[%c0_9, %c0_10] : memref<32x784xf32, #tpu.memory_space<vmem>>, vector<32x784xf32>
    tpu.vector_store %arg4[%c0_9, %c0_10], %21 {strides = array<i32>} : memref<32x784xf32, #tpu.memory_space<vmem>>, vector<32x784xf32>,
    return
  }
  func.func @transform_0(%arg0: i32) -> (i32, i32) {
    %c0_i32 = arith.constant 0 : i32
    %c0_i32_0 = arith.constant 0 : i32
    return %arg0, %c0_i32 : i32, i32
  }
  func.func @transform_1(%arg0: i32) -> (i32, i32) {
    %c0_i32 = arith.constant 0 : i32
    %c0_i32_0 = arith.constant 0 : i32
    return %arg0, %c0_i32 : i32, i32
  }
  func.func @transform_2(%arg0: i32) -> (i32, i32) {
    %c0_i32 = arith.constant 0 : i32
    %c0_i32_0 = arith.constant 0 : i32
    return %arg0, %c0_i32 : i32, i32
  }
  func.func @transform_3(%arg0: i32) -> (i32, i32) {
    %c0_i32 = arith.constant 0 : i32
    %c0_i32_0 = arith.constant 0 : i32
    return %arg0, %c0_i32 : i32, i32
  }
}

</mosaic_0001>

<llo_original>
// kernel: tpu_custom_call.1
$region0: #{tpu_custom_call.1}
  #allocation0 [shape = 'u32[]', space=smem, size = 0x4, offset = 0x4, fixed_abs, tag = 'smem constant byte address 0x4 - core index']
  #allocation1 [shape = 'u32[144,128]{1,0:T(1,128)}', space=vmem, size = 0x12000, scoped, tag = 'internal scratch']
  %s0 = inlined_call_operand.hbm [shape: f32[32,784], index: 0, kind: input, shape index: {}]
  %s1 = inlined_call_operand.vmem [shape: f32[32,1], index: 1, kind: input, shape index: {}]
  %s2 = inlined_call_operand.vmem [shape: f32[32,1], index: 2, kind: input, shape index: {}]
  %s3 = inlined_call_operand.hbm [shape: f32[32,784], index: 3, kind: output, shape index: {}]
  %s4 = sld [smem:[#allocation0]]
  $region26: #{tpu_custom_call.1} parent=0
    _
  %s6 = ssub.s32 1, %s4
  %s7 = scalar_select 0, %s6, %s4
  $region1: #{tpu_custom_call.1} parent=0
    #allocation2 [shape = 'u8[114688]{0}', space=vmem, size = 0x1c000, scoped, tag = 'input window, operand 0, single buffered']
    #allocation3 [shape = 's32[1]{0}', space=sflag, size = 0x4, scoped, tag = 'scoped memory for tpu_custom_call.1']
    #allocation4 [shape = 's32[1]{0}', space=sflag, size = 0x4, scoped, tag = 'scoped memory for tpu_custom_call.1']
    #allocation5 [shape = 'u8[114688]{0}', space=vmem, size = 0x1c000, scoped, tag = 'output window, operand 0, single buffered']
    %8 = vsyncpa [#allocation3], 0
    %9 = vsyncpa [#allocation4], 0
    // Predicated region
    $region2: #{tpu_custom_call.1} parent=1 // pred_check
      _
    $region3: #{tpu_custom_call.1} parent=1 // pred_check_branch
      %11 = sbr.rel (0) target = $region5
    $region4: #{tpu_custom_call.1} parent=1 // pred_region
      %s13 = ssub.s32 3584, 3584
      %14 = vsyncadd [#allocation3], %s13
      %s15 = sshll.u32 [#allocation2], 4
      %s16 = int_to_ptr.vmem [resolvable:$true] %s15
      %21 = dma.hbm_to_vmem [thread:$0]  %s0, 3584, %s16, [#allocation3], 896, 896, 56
    $region5: #{tpu_custom_call.1} parent=1 // pred_fallthru
      _
    // Predicated region
    $region6: #{tpu_custom_call.1} parent=1 // pred_check
      _
    $region7: #{tpu_custom_call.1} parent=1 // pred_check_branch
      %23 = sbr.rel (0) target = $region9
    $region8: #{tpu_custom_call.1} parent=1 // pred_region
      _
    $region9: #{tpu_custom_call.1} parent=1 // pred_fallthru
      _
    // Predicated region
    $region10: #{tpu_custom_call.1} parent=1 // pred_check
      _
    $region11: #{tpu_custom_call.1} parent=1 // pred_check_branch
      %25 = sbr.rel (0) target = $region13
    $region12: #{tpu_custom_call.1} parent=1 // pred_region
      _
    $region13: #{tpu_custom_call.1} parent=1 // pred_fallthru
      _
    // Predicated region
    $region14: #{tpu_custom_call.1} parent=1 // pred_check
      _
    $region15: #{tpu_custom_call.1} parent=1 // pred_check_branch
      %27 = sbr.rel (0) target = $region17
    $region16: #{tpu_custom_call.1} parent=1 // pred_region
      %28 = dma.done [#allocation3], 3584
    $region17: #{tpu_custom_call.1} parent=1 // pred_fallthru
      _
    %v29 = vld [vmem:[#allocation2] sm:$0xff]
    %v30 = vld [vmem:[#allocation2 + $0x8] sm:$0xff]
    %v31 = vld [vmem:[#allocation2 + $0x10] sm:$0xff]
    %v32 = vld [vmem:[#allocation2 + $0x18] sm:$0xff]
    %v33 = vld [vmem:[#allocation2 + $0x20] sm:$0xff]
    %v34 = vld [vmem:[#allocation2 + $0x28] sm:$0xff]
    %v35 = vld [vmem:[#allocation2 + $0x30] sm:$0xff]
    %v36 = vld [vmem:[#allocation2 + $0x38] sm:$0xff]
    %v37 = vld [vmem:[#allocation2 + $0x40] sm:$0xff]
    %v38 = vld [vmem:[#allocation2 + $0x48] sm:$0xff]
    %v39 = vld [vmem:[#allocation2 + $0x50] sm:$0xff]
    %v40 = vld [vmem:[#allocation2 + $0x58] sm:$0xff]
    %v41 = vld [vmem:[#allocation2 + $0x60] sm:$0xff]
    %v42 = vld [vmem:[#allocation2 + $0x68] sm:$0xff]
    %v43 = vld [vmem:[#allocation2 + $0x70] sm:$0xff]
    %v44 = vld [vmem:[#allocation2 + $0x78] sm:$0xff]
    %v45 = vld [vmem:[#allocation2 + $0x80] sm:$0xff]
    %v46 = vld [vmem:[#allocation2 + $0x88] sm:$0xff]
    %v47 = vld [vmem:[#allocation2 + $0x90] sm:$0xff]
    %v48 = vld [vmem:[#allocation2 + $0x98] sm:$0xff]
    %v49 = vld [vmem:[#allocation2 + $0xa0] sm:$0xff]
    %v50 = vld [vmem:[#allocation2 + $0xa8] sm:$0xff]
    %v51 = vld [vmem:[#allocation2 + $0xb0] sm:$0xff]
    %v52 = vld [vmem:[#allocation2 + $0xb8] sm:$0xff]
    %v53 = vld [vmem:[#allocation2 + $0xc0] sm:$0xff]
    %v54 = vld [vmem:[#allocation2 + $0xc8] sm:$0xff]
    %v55 = vld [vmem:[#allocation2 + $0xd0] sm:$0xff]
    %v56 = vld [vmem:[#allocation2 + $0xd8] sm:$0xff]
    %v57 = vadd.f32 %v29, %v30
    %v58 = vadd.f32 %v57, %v31
    %v59 = vadd.f32 %v58, %v32
    %v60 = vadd.f32 %v59, %v33
    %v61 = vadd.f32 %v60, %v34
    %vm62 = vcmask 130048
    %v63 = vsel %vm62, %v35, 0.0
    %v64 = vadd.f32 %v61, %v63
    %65 = vadd.xlane.f32.xlu0 %v64
    %v66 = vpop.xlane.xlu0 %65
    %v67 = vadd.f32 %v36, %v37
    %v68 = vadd.f32 %v67, %v38
    %v69 = vadd.f32 %v68, %v39
    %v70 = vadd.f32 %v69, %v40
    %v71 = vadd.f32 %v70, %v41
    %v72 = vsel %vm62, %v42, 0.0
    %v73 = vadd.f32 %v71, %v72
    %74 = vadd.xlane.f32.xlu0 %v73
    %v75 = vpop.xlane.xlu0 %74
    %v76 = vadd.f32 %v43, %v44
    %v77 = vadd.f32 %v76, %v45
    %v78 = vadd.f32 %v77, %v46
    %v79 = vadd.f32 %v78, %v47
    %v80 = vadd.f32 %v79, %v48
    %v81 = vsel %vm62, %v49, 0.0
    %v82 = vadd.f32 %v80, %v81
    %83 = vadd.xlane.f32.xlu0 %v82
    %v84 = vpop.xlane.xlu0 %83
    %v85 = vadd.f32 %v50, %v51
    %v86 = vadd.f32 %v85, %v52
    %v87 = vadd.f32 %v86, %v53
    %v88 = vadd.f32 %v87, %v54
    %v89 = vadd.f32 %v88, %v55
    %v90 = vsel %vm62, %v56, 0.0
    %v91 = vadd.f32 %v89, %v90
    %92 = vadd.xlane.f32.xlu0 %v91
    %v93 = vpop.xlane.xlu0 %92
    %v94 = vmul.f32 %v66, 0.0012755102
    %v95 = vmul.f32 %v75, 0.0012755102
    %v96 = vmul.f32 %v84, 0.0012755102
    %v97 = vmul.f32 %v93, 0.0012755102
    %v98 = vsub.f32 %v29, %v94
    %v99 = vsub.f32 %v30, %v94
    %v100 = vsub.f32 %v31, %v94
    %v101 = vsub.f32 %v32, %v94
    %v102 = vsub.f32 %v33, %v94
    %v103 = vsub.f32 %v34, %v94
    %v104 = vsub.f32 %v35, %v94
    %v105 = vsub.f32 %v36, %v95
    %v106 = vsub.f32 %v37, %v95
    %v107 = vsub.f32 %v38, %v95
    %v108 = vsub.f32 %v39, %v95
    %v109 = vsub.f32 %v40, %v95
    %v110 = vsub.f32 %v41, %v95
    %v111 = vsub.f32 %v42, %v95
    %v112 = vsub.f32 %v43, %v96
    %v113 = vsub.f32 %v44, %v96
    %v114 = vsub.f32 %v45, %v96
    %v115 = vsub.f32 %v46, %v96
    %v116 = vsub.f32 %v47, %v96
    %v117 = vsub.f32 %v48, %v96
    %v118 = vsub.f32 %v49, %v96
    %v119 = vsub.f32 %v50, %v97
    %v120 = vsub.f32 %v51, %v97
    %v121 = vsub.f32 %v52, %v97
    %v122 = vsub.f32 %v53, %v97
    %v123 = vsub.f32 %v54, %v97
    %v124 = vsub.f32 %v55, %v97
    %v125 = vsub.f32 %v56, %v97
    %v126 = vmul.f32 %v98, %v98
    %v127 = vmul.f32 %v99, %v99
    %v128 = vmul.f32 %v100, %v100
    %v129 = vmul.f32 %v101, %v101
    %v130 = vmul.f32 %v102, %v102
    %v131 = vmul.f32 %v103, %v103
    %v132 = vmul.f32 %v104, %v104
    %v133 = vmul.f32 %v105, %v105
    %v134 = vmul.f32 %v106, %v106
    %v135 = vmul.f32 %v107, %v107
    %v136 = vmul.f32 %v108, %v108
    %v137 = vmul.f32 %v109, %v109
    %v138 = vmul.f32 %v110, %v110
    %v139 = vmul.f32 %v111, %v111
    %v140 = vmul.f32 %v112, %v112
    %v141 = vmul.f32 %v113, %v113
    %v142 = vmul.f32 %v114, %v114
    %v143 = vmul.f32 %v115, %v115
    %v144 = vmul.f32 %v116, %v116
    %v145 = vmul.f32 %v117, %v117
    %v146 = vmul.f32 %v118, %v118
    %v147 = vmul.f32 %v119, %v119
    %v148 = vmul.f32 %v120, %v120
    %v149 = vmul.f32 %v121, %v121
    %v150 = vmul.f32 %v122, %v122
    %v151 = vmul.f32 %v123, %v123
    %v152 = vmul.f32 %v124, %v124
    %v153 = vmul.f32 %v125, %v125
    %v154 = vadd.f32 %v126, %v127
    %v155 = vadd.f32 %v154, %v128
    %v156 = vadd.f32 %v155, %v129
    %v157 = vadd.f32 %v156, %v130
    %v158 = vadd.f32 %v157, %v131
    %v159 = vsel %vm62, %v132, 0.0
    %v160 = vadd.f32 %v158, %v159
    %161 = vadd.xlane.f32.xlu0 %v160
    %v162 = vpop.xlane.xlu0 %161
    %v163 = vadd.f32 %v133, %v134
    %v164 = vadd.f32 %v163, %v135
    %v165 = vadd.f32 %v164, %v136
    %v166 = vadd.f32 %v165, %v137
    %v167 = vadd.f32 %v166, %v138
    %v168 = vsel %vm62, %v139, 0.0
    %v169 = vadd.f32 %v167, %v168
    %170 = vadd.xlane.f32.xlu0 %v169
    %v171 = vpop.xlane.xlu0 %170
    %v172 = vadd.f32 %v140, %v141
    %v173 = vadd.f32 %v172, %v142
    %v174 = vadd.f32 %v173, %v143
    %v175 = vadd.f32 %v174, %v144
    %v176 = vadd.f32 %v175, %v145
    %v177 = vsel %vm62, %v146, 0.0
    %v178 = vadd.f32 %v176, %v177
    %179 = vadd.xlane.f32.xlu0 %v178
    %v180 = vpop.xlane.xlu0 %179
    %v181 = vadd.f32 %v147, %v148
    %v182 = vadd.f32 %v181, %v149
    %v183 = vadd.f32 %v182, %v150
    %v184 = vadd.f32 %v183, %v151
    %v185 = vadd.f32 %v184, %v152
    %v186 = vsel %vm62, %v153, 0.0
    %v187 = vadd.f32 %v185, %v186
    %188 = vadd.xlane.f32.xlu0 %v187
    %v189 = vpop.xlane.xlu0 %188
    %v190 = vmul.f32 %v162, 0.0012755102
    %v191 = vmul.f32 %v171, 0.0012755102
    %v192 = vmul.f32 %v180, 0.0012755102
    %v193 = vmul.f32 %v189, 0.0012755102
    %v194 = vadd.f32 %v190, 1e-05
    %v195 = vadd.f32 %v191, 1e-05
    %v196 = vadd.f32 %v192, 1e-05
    %v197 = vadd.f32 %v193, 1e-05
    %v198 = vrsqrt.pop %v194
    %v199 = vrsqrt.pop %v195
    %v200 = vrsqrt.pop %v196
    %v201 = vrsqrt.pop %v197
    %v202 = vld [vmem:[%s1] sm:$0xff]
    %v203 = vld [vmem:[%s1 + $0x8] sm:$0xff]
    %v204 = vld [vmem:[%s1 + $0x10] sm:$0xff]
    %v205 = vld [vmem:[%s1 + $0x18] sm:$0xff]
    %v206 = vmul.f32 %v202, %v198
    %v207 = vmul.f32 %v203, %v199
    %v208 = vmul.f32 %v204, %v200
    %v209 = vmul.f32 %v205, %v201
    %211 = vset.pattern.permute.xlu0 0
    %212 = vperm.xlu0 %211, %v206
    %v213 = vpop.permute.xlu0 %212
    %216 = vset.pattern.permute.xlu0 0
    %217 = vperm.xlu0 %216, %v207
    %v218 = vpop.permute.xlu0 %217
    %221 = vset.pattern.permute.xlu0 0
    %222 = vperm.xlu0 %221, %v208
    %v223 = vpop.permute.xlu0 %222
    %226 = vset.pattern.permute.xlu0 0
    %227 = vperm.xlu0 %226, %v209
    %v228 = vpop.permute.xlu0 %227
    %v230 = vmul.f32 %v98, %v213
    %v231 = vmul.f32 %v99, %v213
    %v232 = vmul.f32 %v100, %v213
    %v233 = vmul.f32 %v101, %v213
    %v234 = vmul.f32 %v102, %v213
    %v235 = vmul.f32 %v103, %v213
    %v236 = vmul.f32 %v104, %v213
    %v237 = vmul.f32 %v105, %v218
    %v238 = vmul.f32 %v106, %v218
    %v239 = vmul.f32 %v107, %v218
    %v240 = vmul.f32 %v108, %v218
    %v241 = vmul.f32 %v109, %v218
    %v242 = vmul.f32 %v110, %v218
    %v243 = vmul.f32 %v111, %v218
    %v244 = vmul.f32 %v112, %v223
    %v245 = vmul.f32 %v113, %v223
    %v246 = vmul.f32 %v114, %v223
    %v247 = vmul.f32 %v115, %v223
    %v248 = vmul.f32 %v116, %v223
    %v249 = vmul.f32 %v117, %v223
    %v250 = vmul.f32 %v118, %v223
    %v251 = vmul.f32 %v119, %v228
    %v252 = vmul.f32 %v120, %v228
    %v253 = vmul.f32 %v121, %v228
    %v254 = vmul.f32 %v122, %v228
    %v255 = vmul.f32 %v123, %v228
    %v256 = vmul.f32 %v124, %v228
    %v257 = vmul.f32 %v125, %v228
    %v258 = vld [vmem:[%s2] sm:$0xff]
    %v259 = vld [vmem:[%s2 + $0x8] sm:$0xff]
    %v260 = vld [vmem:[%s2 + $0x10] sm:$0xff]
    %v261 = vld [vmem:[%s2 + $0x18] sm:$0xff]
    %263 = vset.pattern.permute.xlu0 0
    %264 = vperm.xlu0 %263, %v258
    %v265 = vpop.permute.xlu0 %264
    %268 = vset.pattern.permute.xlu0 0
    %269 = vperm.xlu0 %268, %v259
    %v270 = vpop.permute.xlu0 %269
    %273 = vset.pattern.permute.xlu0 0
    %274 = vperm.xlu0 %273, %v260
    %v275 = vpop.permute.xlu0 %274
    %278 = vset.pattern.permute.xlu0 0
    %279 = vperm.xlu0 %278, %v261
    %v280 = vpop.permute.xlu0 %279
    %v282 = vadd.f32 %v230, %v265
    %v283 = vadd.f32 %v231, %v265
    %v284 = vadd.f32 %v232, %v265
    %v285 = vadd.f32 %v233, %v265
    %v286 = vadd.f32 %v234, %v265
    %v287 = vadd.f32 %v235, %v265
    %v288 = vadd.f32 %v236, %v265
    %v289 = vadd.f32 %v237, %v270
    %v290 = vadd.f32 %v238, %v270
    %v291 = vadd.f32 %v239, %v270
    %v292 = vadd.f32 %v240, %v270
    %v293 = vadd.f32 %v241, %v270
    %v294 = vadd.f32 %v242, %v270
    %v295 = vadd.f32 %v243, %v270
    %v296 = vadd.f32 %v244, %v275
    %v297 = vadd.f32 %v245, %v275
    %v298 = vadd.f32 %v246, %v275
    %v299 = vadd.f32 %v247, %v275
    %v300 = vadd.f32 %v248, %v275
    %v301 = vadd.f32 %v249, %v275
    %v302 = vadd.f32 %v250, %v275
    %v303 = vadd.f32 %v251, %v280
    %v304 = vadd.f32 %v252, %v280
    %v305 = vadd.f32 %v253, %v280
    %v306 = vadd.f32 %v254, %v280
    %v307 = vadd.f32 %v255, %v280
    %v308 = vadd.f32 %v256, %v280
    %v309 = vadd.f32 %v257, %v280
    %310 = vst [vmem:[#allocation5] sm:$0xff] %v282
    %311 = vst [vmem:[#allocation5 + $0x8] sm:$0xff] %v283
    %312 = vst [vmem:[#allocation5 + $0x10] sm:$0xff] %v284
    %313 = vst [vmem:[#allocation5 + $0x18] sm:$0xff] %v285
    %314 = vst [vmem:[#allocation5 + $0x20] sm:$0xff] %v286
    %315 = vst [vmem:[#allocation5 + $0x28] sm:$0xff] %v287
    %316 = vst.msk [vmem:[#allocation5 + $0x30] sm:$0xff] %vm62, %v288
    %317 = vst [vmem:[#allocation5 + $0x38] sm:$0xff] %v289
    %318 = vst [vmem:[#allocation5 + $0x40] sm:$0xff] %v290
    %319 = vst [vmem:[#allocation5 + $0x48] sm:$0xff] %v291
    %320 = vst [vmem:[#allocation5 + $0x50] sm:$0xff] %v292
    %321 = vst [vmem:[#allocation5 + $0x58] sm:$0xff] %v293
    %322 = vst [vmem:[#allocation5 + $0x60] sm:$0xff] %v294
    %323 = vst.msk [vmem:[#allocation5 + $0x68] sm:$0xff] %vm62, %v295
    %324 = vst [vmem:[#allocation5 + $0x70] sm:$0xff] %v296
    %325 = vst [vmem:[#allocation5 + $0x78] sm:$0xff] %v297
    %326 = vst [vmem:[#allocation5 + $0x80] sm:$0xff] %v298
    %327 = vst [vmem:[#allocation5 + $0x88] sm:$0xff] %v299
    %328 = vst [vmem:[#allocation5 + $0x90] sm:$0xff] %v300
    %329 = vst [vmem:[#allocation5 + $0x98] sm:$0xff] %v301
    %330 = vst.msk [vmem:[#allocation5 + $0xa0] sm:$0xff] %vm62, %v302
    %331 = vst [vmem:[#allocation5 + $0xa8] sm:$0xff] %v303
    %332 = vst [vmem:[#allocation5 + $0xb0] sm:$0xff] %v304
    %333 = vst [vmem:[#allocation5 + $0xb8] sm:$0xff] %v305
    %334 = vst [vmem:[#allocation5 + $0xc0] sm:$0xff] %v306
    %335 = vst [vmem:[#allocation5 + $0xc8] sm:$0xff] %v307
    %336 = vst [vmem:[#allocation5 + $0xd0] sm:$0xff] %v308
    %337 = vst.msk [vmem:[#allocation5 + $0xd8] sm:$0xff] %vm62, %v309
    // Predicated region
    $region18: #{tpu_custom_call.1} parent=1 // pred_check
      _
    $region19: #{tpu_custom_call.1} parent=1 // pred_check_branch
      %339 = sbr.rel (0) target = $region21
    $region20: #{tpu_custom_call.1} parent=1 // pred_region
      %s341 = ssub.s32 3584, 3584
      %342 = vsyncadd [#allocation4], %s341
      %s343 = sshll.u32 [#allocation5], 4
      %s344 = int_to_ptr.vmem [resolvable:$true] %s343
      %349 = dma.vmem_to_hbm [thread:$0]  %s344, 3584, %s3, [#allocation4], 896, 896, 56
    $region21: #{tpu_custom_call.1} parent=1 // pred_fallthru
      _
    // Predicated region
    $region22: #{tpu_custom_call.1} parent=1 // pred_check
      _
    $region23: #{tpu_custom_call.1} parent=1 // pred_check_branch
      %351 = sbr.rel (0) target = $region25
    $region24: #{tpu_custom_call.1} parent=1 // pred_region
      %352 = dma.done [#allocation4], 3584
    $region25: #{tpu_custom_call.1} parent=1 // pred_fallthru
      _
    %353 = vsyncpa [#allocation3], 1
    %354 = vsyncpa [#allocation4], 1

</llo_original>
